<compile_context>
chip_gen: v7x
topology: tpu7x:2x2x1
jax: 0.10.0
libtpu: 0.0.40
codegen_flags: <defaults>
</compile_context>

<pallas_src>
import functools
import math

import jax
import jax.numpy as jnp
from jax.experimental import pallas as pl
from jax.experimental.pallas import tpu as pltpu


def _proj_logsoftmax_kernel(x_ref, w_ref, b_ref, o_ref, m_ref, l_ref, *, tile_v):
    # x_ref: (TM, D) bf16, w_ref: (D, TV) bf16, b_ref: (1, TV) f32,
    # o_ref: (TM, Vp) out_dtype (resident across the V grid axis),
    # m_ref / l_ref: (TM, 1) f32 running max / running sum-of-exp.
    j = pl.program_id(1)
    n_v = pl.num_programs(1)

    @pl.when(j == 0)
    def _init():
        m_ref[...] = jnp.full_like(m_ref, -jnp.inf)
        l_ref[...] = jnp.zeros_like(l_ref)

    # bf16 x bf16 -> f32 accumulation on the MXU; everything after is f32.
    logits = jnp.dot(x_ref[...], w_ref[...], preferred_element_type=jnp.float32)
    logits = logits + b_ref[...]

    # Online (streaming) logsumexp update across vocab tiles.
    m_prev = m_ref[...]
    m_new = jnp.maximum(m_prev, jnp.max(logits, axis=-1, keepdims=True))
    l_ref[...] = l_ref[...] * jnp.exp(m_prev - m_new) + jnp.sum(
        jnp.exp(logits - m_new), axis=-1, keepdims=True)
    m_ref[...] = m_new

    # Stage raw logits into the resident output block (doubles as the slab).
    off = pl.multiple_of(j * tile_v, 128)
    o_ref[:, pl.ds(off, tile_v)] = logits.astype(o_ref.dtype)

    @pl.when(j == n_v - 1)
    def _finalize():
        lse = m_ref[...] + jnp.log(l_ref[...])
        o_ref[...] = (o_ref[...].astype(jnp.float32) - lse).astype(o_ref.dtype)


def _round_up(a, b):
    return (a + b - 1) // b * b


def projection_layer(x, weight, bias, *, tile_rows=256, tile_v=2048,
                     out_dtype=jnp.float32,
                     vmem_limit_bytes=48 * 1024 * 1024):
    """log_softmax(x @ weight.T + bias, axis=-1).

    x: (B, S, D) f32; weight: (V, D) f32 (nn.Linear layout); bias: (V,) f32.
    Returns (B, S, V) in `out_dtype`.
    """
    B, S, D = x.shape
    V, D_w = weight.shape
    assert D == D_w, "weight must be (vocab_size, d_model)"
    M = B * S

    # Row tiling: sublane-aligned, clamped to the problem, padded up (no assert).
    tm = min(_round_up(tile_rows, 8), _round_up(M, 8))
    Mp = _round_up(M, tm)

    # Vocab tiling: lane-aligned; padded columns get a huge negative bias so
    # they contribute exp(.) = 0 to the logsumexp and are sliced off afterwards.
    tv = min(_round_up(tile_v, 128), _round_up(V, 128))
    Vp = _round_up(V, tv)

    x2d = x.reshape(M, D)
    if Mp != M:
        x2d = jnp.pad(x2d, ((0, Mp - M), (0, 0)))
    x2d = x2d.astype(jnp.bfloat16)                       # MXU operand dtype

    w_t = weight.T.astype(jnp.bfloat16)                  # (D, V)
    b2d = bias.astype(jnp.float32).reshape(1, V)
    if Vp != V:
        w_t = jnp.pad(w_t, ((0, 0), (0, Vp - V)))
        b2d = jnp.pad(b2d, ((0, 0), (0, Vp - V)), constant_values=-1e30)

    grid = (Mp // tm, Vp // tv)
    kernel = functools.partial(_proj_logsoftmax_kernel, tile_v=tv)

    out2d = pl.pallas_call(
        kernel,
        out_shape=jax.ShapeDtypeStruct((Mp, Vp), out_dtype),
        grid_spec=pltpu.PrefetchScalarGridSpec(
            num_scalar_prefetch=0,
            grid=grid,
            in_specs=[
                pl.BlockSpec((tm, D), lambda i, j: (i, 0)),   # activations (resident over j)
                pl.BlockSpec((D, tv), lambda i, j: (0, j)),   # streamed weight tile
                pl.BlockSpec((1, tv), lambda i, j: (0, j)),   # streamed bias tile
            ],
            out_specs=pl.BlockSpec((tm, Vp), lambda i, j: (i, 0)),
            scratch_shapes=[
                pltpu.VMEM((tm, 1), jnp.float32),   # running max
                pltpu.VMEM((tm, 1), jnp.float32),   # running sum of exp
            ],
        ),
        compiler_params=pltpu.CompilerParams(
            dimension_semantics=("parallel", "arbitrary"),
            vmem_limit_bytes=vmem_limit_bytes,
        ),
    )(x2d, w_t, b2d)

    return out2d[:M, :V].reshape(B, S, V)


if __name__ == "__main__":
    key = jax.random.PRNGKey(0)

    def run_case(batch, seq, d_model, vocab_size, **kw):
        kx, kw_, kb = jax.random.split(jax.random.fold_in(key, vocab_size), 3)
        bound = 1.0 / math.sqrt(d_model)
        weight = jax.random.uniform(kw_, (vocab_size, d_model), jnp.float32,
                                    -bound, bound)
        bias = jax.random.uniform(kb, (vocab_size,), jnp.float32, -bound, bound)
        x = jax.random.normal(kx, (batch, seq, d_model), jnp.float32)

        out = jax.block_until_ready(projection_layer(x, weight, bias, **kw))

        # Reference with matching bf16 operand precision (softmax math in f32).
        logits = jnp.dot(x.reshape(-1, d_model).astype(jnp.bfloat16),
                         weight.T.astype(jnp.bfloat16),
                         preferred_element_type=jnp.float32) + bias
        ref = jax.nn.log_softmax(logits, axis=-1).reshape(batch, seq, vocab_size)

        assert out.shape == (batch, seq, vocab_size)
        err = jnp.max(jnp.abs(out - ref))
        assert jnp.allclose(out, ref, atol=2e-3, rtol=2e-3), f"mismatch, max err={err}"

    # Case 1: exercises vocab tiling + vocab padding (V=200 -> 2 tiles of 128).
    run_case(2, 8, 32, 200, tile_v=128)
    # Case 2: exercises row padding (M=21 -> padded to 24) with default tiles.
    run_case(3, 7, 32, 384)

    print("KERNEL_OK")
</pallas_src>

<mosaic_0001>
module attributes {stable_mosaic.version = 11 : i64} {
  func.func @_proj_logsoftmax_kernel(%arg0: i32, %arg1: i32, %arg2: memref<16x32xbf16, #tpu.memory_space<vmem>>, %arg3: memref<32x128xbf16, #tpu.memory_space<vmem>>, %arg4: memref<1x128xf32, #tpu.memory_space<vmem>>, %arg5: memref<16x256xf32, #tpu.memory_space<vmem>>, %arg6: memref<16x1xf32, #tpu.memory_space<vmem>>, %arg7: memref<16x1xf32, #tpu.memory_space<vmem>>) attributes {dimension_semantics = [#tpu.dimension_semantics<parallel>, #tpu.dimension_semantics<arbitrary>], iteration_bounds = array<i64: 1, 2>, scalar_prefetch = 0 : i64, scratch_operands = 2 : i64, tpu.core_type = #tpu.core_type<tc>, window_params = [{transform_indices = @transform_0, window_bounds = array<i64: 16, 32>}, {transform_indices = @transform_1, window_bounds = array<i64: 32, 128>}, {transform_indices = @transform_2, window_bounds = array<i64: 1, 128>}, {transform_indices = @transform_3, window_bounds = array<i64: 16, 256>}]} {
    %c0_i32 = arith.constant 0 : i32
    %0 = arith.cmpi eq, %arg1, %c0_i32 : i32
    %1 = arith.extui %0 : i1 to i32
    %c0_i32_0 = arith.constant 0 : i32
    %2 = arith.cmpi ne, %1, %c0_i32_0 : i32
    scf.if %2 {
      %cst_18 = arith.constant 0xFF800000 : f32
      %32 = vector.broadcast %cst_18 : f32 to vector<16x1xf32>
      %c0_19 = arith.constant 0 : index
      %c0_20 = arith.constant 0 : index
      %33 = vector.load %arg6[%c0_19, %c0_20] : memref<16x1xf32, #tpu.memory_space<vmem>>, vector<16x1xf32>
      tpu.vector_store %arg6[%c0_19, %c0_20], %32 {strides = array<i32>} : memref<16x1xf32, #tpu.memory_space<vmem>>, vector<16x1xf32>,
      %cst_21 = arith.constant 0.000000e+00 : f32
      %34 = vector.broadcast %cst_21 : f32 to vector<16x1xf32>
      %c0_22 = arith.constant 0 : index
      %c0_23 = arith.constant 0 : index
      %35 = vector.load %arg7[%c0_22, %c0_23] : memref<16x1xf32, #tpu.memory_space<vmem>>, vector<16x1xf32>
      tpu.vector_store %arg7[%c0_22, %c0_23], %34 {strides = array<i32>} : memref<16x1xf32, #tpu.memory_space<vmem>>, vector<16x1xf32>,
    } else {
    }
    %c0 = arith.constant 0 : index
    %c0_1 = arith.constant 0 : index
    %3 = vector.load %arg2[%c0, %c0_1] : memref<16x32xbf16, #tpu.memory_space<vmem>>, vector<16x32xbf16>
    %c0_2 = arith.constant 0 : index
    %c0_3 = arith.constant 0 : index
    %4 = vector.load %arg3[%c0_2, %c0_3] : memref<32x128xbf16, #tpu.memory_space<vmem>>, vector<32x128xbf16>
    %cst = arith.constant dense<0.000000e+00> : vector<16x128xf32>
    %5 = tpu.matmul %3, %4, %cst {dimension_numbers = #tpu.dot_dimension_numbers<[1], [0], [0], [1], [0, 0, 1, 1], [], []>} : vector<16x32xbf16>, vector<32x128xbf16>, vector<16x128xf32> -> vector<16x128xf32>
    %c0_4 = arith.constant 0 : index
    %c0_5 = arith.constant 0 : index
    %6 = vector.load %arg4[%c0_4, %c0_5] : memref<1x128xf32, #tpu.memory_space<vmem>>, vector<1x128xf32>
    %7 = vector.broadcast %6 : vector<1x128xf32> to vector<16x128xf32>
    %8 = arith.addf %5, %7 : vector<16x128xf32>
    %c0_6 = arith.constant 0 : index
    %c0_7 = arith.constant 0 : index
    %9 = vector.load %arg6[%c0_6, %c0_7] : memref<16x1xf32, #tpu.memory_space<vmem>>, vector<16x1xf32>
    %cst_8 = arith.constant dense<0xFF800000> : vector<16xf32>
    %10 = vector.multi_reduction <maximumf>, %8, %cst_8 [1] : vector<16x128xf32> to vector<16xf32>
    %11 = vector.shape_cast %10 : vector<16xf32> to vector<16x1xf32>
    %12 = arith.maximumf %9, %11 : vector<16x1xf32>
    %c0_9 = arith.constant 0 : index
    %c0_10 = arith.constant 0 : index
    %13 = vector.load %arg7[%c0_9, %c0_10] : memref<16x1xf32, #tpu.memory_space<vmem>>, vector<16x1xf32>
    %14 = arith.subf %9, %12 : vector<16x1xf32>
    %15 = math.exp %14 : vector<16x1xf32>
    %16 = arith.mulf %13, %15 : vector<16x1xf32>
    %17 = vector.broadcast %12 : vector<16x1xf32> to vector<16x128xf32>
    %18 = arith.subf %8, %17 : vector<16x128xf32>
    %19 = math.exp %18 : vector<16x128xf32>
    %cst_11 = arith.constant dense<0.000000e+00> : vector<16xf32>
    %20 = vector.multi_reduction <add>, %19, %cst_11 [1] : vector<16x128xf32> to vector<16xf32>
    %21 = vector.shape_cast %20 : vector<16xf32> to vector<16x1xf32>
    %22 = arith.addf %16, %21 : vector<16x1xf32>
    %c0_12 = arith.constant 0 : index
    %c0_13 = arith.constant 0 : index
    %23 = vector.load %arg7[%c0_12, %c0_13] : memref<16x1xf32, #tpu.memory_space<vmem>>, vector<16x1xf32>
    tpu.vector_store %arg7[%c0_12, %c0_13], %22 {strides = array<i32>} : memref<16x1xf32, #tpu.memory_space<vmem>>, vector<16x1xf32>,
    %c0_14 = arith.constant 0 : index
    %c0_15 = arith.constant 0 : index
    %24 = vector.load %arg6[%c0_14, %c0_15] : memref<16x1xf32, #tpu.memory_space<vmem>>, vector<16x1xf32>
    tpu.vector_store %arg6[%c0_14, %c0_15], %12 {strides = array<i32>} : memref<16x1xf32, #tpu.memory_space<vmem>>, vector<16x1xf32>,
    %c128_i32 = arith.constant 128 : i32
    %25 = arith.muli %arg1, %c128_i32 : i32
    %26 = tpu.assume_multiple %25, 128 : i32
    %c0_16 = arith.constant 0 : index
    %27 = arith.index_cast %26 : i32 to index
    %28 = vector.load %arg5[%c0_16, %27] : memref<16x256xf32, #tpu.memory_space<vmem>>, vector<16x128xf32>
    tpu.vector_store %arg5[%c0_16, %27], %8 {strides = array<i32>} : memref<16x256xf32, #tpu.memory_space<vmem>>, vector<16x128xf32>,
    %c1_i32 = arith.constant 1 : i32
    %29 = arith.cmpi eq, %arg1, %c1_i32 : i32
    %30 = arith.extui %29 : i1 to i32
    %c0_i32_17 = arith.constant 0 : i32
    %31 = arith.cmpi ne, %30, %c0_i32_17 : i32
    scf.if %31 {
      %c0_18 = arith.constant 0 : index
      %c0_19 = arith.constant 0 : index
      %32 = vector.load %arg6[%c0_18, %c0_19] : memref<16x1xf32, #tpu.memory_space<vmem>>, vector<16x1xf32>
      %c0_20 = arith.constant 0 : index
      %c0_21 = arith.constant 0 : index
      %33 = vector.load %arg7[%c0_20, %c0_21] : memref<16x1xf32, #tpu.memory_space<vmem>>, vector<16x1xf32>
      %34 = math.log %33 : vector<16x1xf32>
      %35 = arith.addf %32, %34 : vector<16x1xf32>
      %c0_22 = arith.constant 0 : index
      %c0_23 = arith.constant 0 : index
      %36 = vector.load %arg5[%c0_22, %c0_23] : memref<16x256xf32, #tpu.memory_space<vmem>>, vector<16x256xf32>
      %37 = vector.broadcast %35 : vector<16x1xf32> to vector<16x256xf32>
      %38 = arith.subf %36, %37 : vector<16x256xf32>
      %c0_24 = arith.constant 0 : index
      %c0_25 = arith.constant 0 : index
      %39 = vector.load %arg5[%c0_24, %c0_25] : memref<16x256xf32, #tpu.memory_space<vmem>>, vector<16x256xf32>
      tpu.vector_store %arg5[%c0_24, %c0_25], %38 {strides = array<i32>} : memref<16x256xf32, #tpu.memory_space<vmem>>, vector<16x256xf32>,
    } else {
    }
    return
  }
  func.func @transform_0(%arg0: i32, %arg1: i32) -> (i32, i32) {
    %c0_i32 = arith.constant 0 : i32
    %c0_i32_0 = arith.constant 0 : i32
    return %arg0, %c0_i32 : i32, i32
  }
  func.func @transform_1(%arg0: i32, %arg1: i32) -> (i32, i32) {
    %c0_i32 = arith.constant 0 : i32
    %c0_i32_0 = arith.constant 0 : i32
    return %c0_i32, %arg1 : i32, i32
  }
  func.func @transform_2(%arg0: i32, %arg1: i32) -> (i32, i32) {
    %c0_i32 = arith.constant 0 : i32
    %c0_i32_0 = arith.constant 0 : i32
    return %c0_i32, %arg1 : i32, i32
  }
  func.func @transform_3(%arg0: i32, %arg1: i32) -> (i32, i32) {
    %c0_i32 = arith.constant 0 : i32
    %c0_i32_0 = arith.constant 0 : i32
    return %arg0, %c0_i32 : i32, i32
  }
}

</mosaic_0001>

<llo_original>
// kernel: tpu_custom_call.1
$region0: #{tpu_custom_call.1}
  #allocation0 [shape = 'u32[]', space=smem, size = 0x4, offset = 0x4, fixed_abs, tag = 'smem constant byte address 0x4 - core index']
  #allocation1 [shape = 'u32[144,128]{1,0:T(1,128)}', space=vmem, size = 0x12000, scoped, tag = 'internal scratch']
  #allocation2 [shape = 'f32[16,1]{1,0:T(8,128)}', space=vmem, size = 0x2000, scoped, tag = 'scratch operand']
  #allocation3 [shape = 'f32[16,1]{1,0:T(8,128)}', space=vmem, size = 0x2000, scoped, tag = 'scratch operand']
  %s0 = inlined_call_operand.hbm [shape: bf16[16,32], index: 0, kind: input, shape index: {}]
  %s1 = inlined_call_operand.hbm [shape: bf16[32,256], index: 1, kind: input, shape index: {}]
  %s2 = inlined_call_operand.vmem [shape: f32[1,256], index: 2, kind: input, shape index: {}]
  %s3 = inlined_call_operand.hbm [shape: f32[16,256], index: 3, kind: output, shape index: {}]
  %s4 = sld [smem:[#allocation0]]
  $region61: #{tpu_custom_call.1} parent=0
    _
  %s6 = ssub.s32 1, %s4
  %s7 = scalar_select 0, %s6, %s4
  $region1: #{tpu_custom_call.1} parent=0
    #allocation4 [shape = 'u8[4096]{0}', space=vmem, size = 0x1000, scoped, tag = 'input window, operand 0, single buffered']
    #allocation5 [shape = 's32[2]{0}', space=sflag, size = 0x8, scoped, tag = 'scoped memory for tpu_custom_call.1']
    #allocation6 [shape = 's32[2]{0}', space=sflag, size = 0x8, scoped, tag = 'scoped memory for tpu_custom_call.1']
    #allocation7 [shape = 'u8[16384]{0}', space=vmem, size = 0x4000, scoped, tag = 'input window, operand 1']
    #allocation8 [shape = 's32[2]{0}', space=sflag, size = 0x8, scoped, tag = 'scoped memory for tpu_custom_call.1']
    #allocation9 [shape = 'u8[16384]{0}', space=vmem, size = 0x4000, scoped, tag = 'output window, operand 0, single buffered']
    %8 = vsyncpa [#allocation5], 0
    %9 = vsyncpa [#allocation8], 0
    %s10 = scalar_lea.sflag [#allocation8], 1
    %11 = vsyncpa %s10, 0
    %12 = vsyncpa [#allocation6], 0
    loop: start=0, step=1, limit=4
    $region2: #{tpu_custom_call.1} parent=1 // loop_pre_header
      _
    $region3: #{tpu_custom_call.1} parent=1 // loop_header
      %s14 = sphi 0, %s18
      %p15 = scmp.ge.s32.totalorder %s14, 4
      %s21 = sphi 0, %s33
      %s22 = sphi 0, %s29
      %s23 = sphi 0, %s21
      %s24 = sphi 0, %s22
      %s25 = sphi 0, %s23
      %s26 = sphi 0, %s24
      %s36 = sphi 0, %s38
      %s39 = sphi 0, %s36
      %s40 = sphi 0, %s39
      %s56 = sphi 0, %s40
      %s62 = sphi 0, %s64
      %s65 = sphi 0, %s62
      %s66 = sphi 0, %s65
      %s82 = sphi 0, %s66
      %s88 = sphi 0, %s90
      %s91 = sphi 0, %s88
      %s92 = sphi 0, %s91
      %s108 = sphi 0, %s92
      %s114 = sphi 0, %s116
      %s117 = sphi 0, %s114
      %s118 = sphi 0, %s117
      %s134 = sphi 0, %s118
    $region4: #{tpu_custom_call.1} parent=1 // loop_header_branch
      %17 = sbr.rel (%p15) target = $region8
    $region5: #{tpu_custom_call.1} parent=1 // loop_body
      %s19 = ssub.s32 %s14, 1
      %s20 = ssub.s32 %s14, 2
      %s27 = sadd.s32 1, %s22
      %p28 = scmp.ge.s32.totalorder %s27, 2
      %s29 = scalar_select %p28, 0, %s27
      %s30 = sadd.s32 1, %s21
      %s31 = scalar_select %p28, %s30, %s21
      %p32 = scmp.ge.s32.totalorder %s31, 1
      %s33 = scalar_select %p32, 0, %s31
      %s34 = ssub.s32 %s21, %s33
      %p35 = scmp.eq.s32.totalorder %s34, 0
      %s37 = sadd.s32 %s36, 1
      %s38 = scalar_select %p35, %s36, %s37
      %p41 = pneg %p35
      %p42 = scmp.eq.s32.totalorder %s14, 1
      %p43 = por %p41, %p42
      %p44 = scmp.ne.s32.totalorder %s36, %s39
      %p45 = scmp.eq.s32.totalorder %s14, 0
      %p46 = por %p44, %p45
      %p47 = scmp.ne.s32.totalorder %s36, %s39
      %p48 = scmp.eq.s32.totalorder %s19, 1
      %p49 = por %p47, %p48
      %p50 = scmp.ne.s32.totalorder %s39, %s40
      %p51 = scmp.eq.s32.totalorder %s19, 0
      %p52 = por %p50, %p51
      %p53 = scmp.ne.s32.totalorder %s39, %s40
      %p54 = scmp.eq.s32.totalorder %s20, 1
      %p55 = por %p53, %p54
      %p57 = scmp.ne.s32.totalorder %s40, %s56
      %p58 = scmp.eq.s32.totalorder %s20, 0
      %p59 = por %p57, %p58
      %s60 = ssub.s32 %s22, %s29
      %p61 = scmp.eq.s32.totalorder %s60, 0
      %s63 = sadd.s32 %s62, 1
      %s64 = scalar_select %p61, %s62, %s63
      %p67 = pneg %p61
      %p68 = scmp.eq.s32.totalorder %s14, 1
      %p69 = por %p67, %p68
      %p70 = scmp.ne.s32.totalorder %s62, %s65
      %p71 = scmp.eq.s32.totalorder %s14, 0
      %p72 = por %p70, %p71
      %p73 = scmp.ne.s32.totalorder %s62, %s65
      %p74 = scmp.eq.s32.totalorder %s19, 1
      %p75 = por %p73, %p74
      %p76 = scmp.ne.s32.totalorder %s65, %s66
      %p77 = scmp.eq.s32.totalorder %s19, 0
      %p78 = por %p76, %p77
      %p79 = scmp.ne.s32.totalorder %s65, %s66
      %p80 = scmp.eq.s32.totalorder %s20, 1
      %p81 = por %p79, %p80
      %p83 = scmp.ne.s32.totalorder %s66, %s82
      %p84 = scmp.eq.s32.totalorder %s20, 0
      %p85 = por %p83, %p84
      %s86 = ssub.s32 %s22, %s29
      %p87 = scmp.eq.s32.totalorder %s86, 0
      %s89 = sadd.s32 %s88, 1
      %s90 = scalar_select %p87, %s88, %s89
      %p93 = pneg %p87
      %p94 = scmp.eq.s32.totalorder %s14, 1
      %p95 = por %p93, %p94
      %p96 = scmp.ne.s32.totalorder %s88, %s91
      %p97 = scmp.eq.s32.totalorder %s14, 0
      %p98 = por %p96, %p97
      %p99 = scmp.ne.s32.totalorder %s88, %s91
      %p100 = scmp.eq.s32.totalorder %s19, 1
      %p101 = por %p99, %p100
      %p102 = scmp.ne.s32.totalorder %s91, %s92
      %p103 = scmp.eq.s32.totalorder %s19, 0
      %p104 = por %p102, %p103
      %p105 = scmp.ne.s32.totalorder %s91, %s92
      %p106 = scmp.eq.s32.totalorder %s20, 1
      %p107 = por %p105, %p106
      %p109 = scmp.ne.s32.totalorder %s92, %s108
      %p110 = scmp.eq.s32.totalorder %s20, 0
      %p111 = por %p109, %p110
      %s112 = ssub.s32 %s21, %s33
      %p113 = scmp.eq.s32.totalorder %s112, 0
      %s115 = sadd.s32 %s114, 1
      %s116 = scalar_select %p113, %s114, %s115
      %p119 = pneg %p113
      %p120 = scmp.eq.s32.totalorder %s14, 1
      %p121 = por %p119, %p120
      %p122 = scmp.ne.s32.totalorder %s114, %s117
      %p123 = scmp.eq.s32.totalorder %s14, 0
      %p124 = por %p122, %p123
      %p125 = scmp.ne.s32.totalorder %s114, %s117
      %p126 = scmp.eq.s32.totalorder %s19, 1
      %p127 = por %p125, %p126
      %p128 = scmp.ne.s32.totalorder %s117, %s118
      %p129 = scmp.eq.s32.totalorder %s19, 0
      %p130 = por %p128, %p129
      %p131 = scmp.ne.s32.totalorder %s117, %s118
      %p132 = scmp.eq.s32.totalorder %s20, 1
      %p133 = por %p131, %p132
      %p135 = scmp.ne.s32.totalorder %s118, %s134
      %p136 = scmp.eq.s32.totalorder %s20, 0
      %p137 = por %p135, %p136
      %p138 = scmp.le.s32.totalorder 1, %s14
      %p139 = scmp.lt.s32.totalorder %s14, 3
      %p140 = pnand %p138, %p139
      %p141 = pneg %p140
      // Predicated region
      $region9: #{tpu_custom_call.1} parent=5 // pred_check
        _
      $region10: #{tpu_custom_call.1} parent=5 // pred_check_branch
        %143 = sbr.rel (%p140) target = $region12
      $region11: #{tpu_custom_call.1} parent=5 // pred_region
        %s144 = ssub.s32 %s14, 1
        // Predicated region
        $region13: #{tpu_custom_call.1} parent=11 // pred_check
          %p145 = pneg %p52
        $region14: #{tpu_custom_call.1} parent=11 // pred_check_branch
          %147 = sbr.rel (%p145) target = $region16
        $region15: #{tpu_custom_call.1} parent=11 // pred_region
          %s148 = smul.u32 2, %s23
          %s150 = ssub.s32 128, 128
          %151 = vsyncadd [#allocation5], %s150
          %s152 = smul.addr %s148, 64
          %s153 = scalar_lea.hbm %s0, %s152
          %s154 = sshll.u32 [#allocation4], 4
          %s155 = int_to_ptr.vmem [resolvable:$true] %s154
          %160 = dma.hbm_to_vmem [thread:$0]  %s153, 128, %s155, [#allocation5], 64, 64, 4
        $region16: #{tpu_custom_call.1} parent=11 // pred_fallthru
          _
      $region12: #{tpu_custom_call.1} parent=5 // pred_fallthru
        _
      %p161 = scmp.lt.s32.totalorder %s14, 2
      // Predicated region
      $region17: #{tpu_custom_call.1} parent=5 // pred_check
        %p162 = pneg %p161
      $region18: #{tpu_custom_call.1} parent=5 // pred_check_branch
        %164 = sbr.rel (%p162) target = $region20
      $region19: #{tpu_custom_call.1} parent=5 // pred_region
        // Predicated region
        $region21: #{tpu_custom_call.1} parent=19 // pred_check
          %p165 = pneg %p72
        $region22: #{tpu_custom_call.1} parent=19 // pred_check_branch
          %167 = sbr.rel (%p165) target = $region24
        $region23: #{tpu_custom_call.1} parent=19 // pred_region
          %s168 = sand.u32 %s62, 1
          %s169 = scalar_lea.sflag [#allocation8], %s168
          %s170 = sand.u32 %s62, 1
          %s171 = smul.addr %s170, 16
          %s172 = scalar_lea.vmem [#allocation7], %s171
          %s174 = ssub.s32 256, 256
          %175 = vsyncadd %s169, %s174
          %s176 = smul.addr %s22, 64
          %s177 = scalar_lea.hbm %s1, %s176
          %s178 = sshll.u32 %s172, 4
          %s179 = int_to_ptr.vmem [resolvable:$true] %s178
          %184 = dma.hbm_to_vmem [thread:$0]  %s177, 256, %s179, %s169, 128, 64, 4
        $region24: #{tpu_custom_call.1} parent=19 // pred_fallthru
          _
        // Predicated region
        $region25: #{tpu_custom_call.1} parent=19 // pred_check
          %p185 = pneg %p98
        $region26: #{tpu_custom_call.1} parent=19 // pred_check_branch
          %187 = sbr.rel (%p185) target = $region28
        $region27: #{tpu_custom_call.1} parent=19 // pred_region
          %p188 = scmp.lt.s32.totalorder %s22, 1
          %s189 = scalar_select %p188, %s22, 1
          %s190 = scalar_lea.vmem %s2, %s189
        $region28: #{tpu_custom_call.1} parent=19 // pred_fallthru
          _
      $region20: #{tpu_custom_call.1} parent=5 // pred_fallthru
        _
      %p191 = scmp.le.s32.totalorder 1, %s14
      %p192 = scmp.lt.s32.totalorder %s14, 3
      %p193 = pnand %p191, %p192
      %p194 = pneg %p193
      // Predicated region
      $region29: #{tpu_custom_call.1} parent=5 // pred_check
        _
      $region30: #{tpu_custom_call.1} parent=5 // pred_check_branch
        %196 = sbr.rel (%p193) target = $region32
      $region31: #{tpu_custom_call.1} parent=5 // pred_region
        %s197 = ssub.s32 %s14, 1
        // Predicated region
        $region33: #{tpu_custom_call.1} parent=31 // pred_check
          %p198 = pneg %p52
        $region34: #{tpu_custom_call.1} parent=31 // pred_check_branch
          %200 = sbr.rel (%p198) target = $region36
        $region35: #{tpu_custom_call.1} parent=31 // pred_region
          %201 = dma.done [#allocation5], 128
        $region36: #{tpu_custom_call.1} parent=31 // pred_fallthru
          _
        %s202 = sand.u32 %s65, 1
        %s203 = scalar_lea.sflag [#allocation8], %s202
        %s204 = sand.u32 %s65, 1
        %s205 = smul.addr %s204, 16
        %s206 = scalar_lea.vmem [#allocation7], %s205
        // Predicated region
        $region37: #{tpu_custom_call.1} parent=31 // pred_check
          %p207 = pneg %p78
        $region38: #{tpu_custom_call.1} parent=31 // pred_check_branch
          %209 = sbr.rel (%p207) target = $region40
        $region39: #{tpu_custom_call.1} parent=31 // pred_region
          %210 = dma.done %s203, 256
        $region40: #{tpu_custom_call.1} parent=31 // pred_fallthru
          _
        %p211 = pneg %p52
        %p212 = pneg %p49
        %s213 = sand.u32 %s65, 1
        %s214 = scalar_lea.sflag [#allocation8], %s213
        %s215 = sand.u32 %s65, 1
        %s216 = smul.addr %s215, 16
        %s217 = scalar_lea.vmem [#allocation7], %s216
        %p218 = pneg %p78
        %p219 = pneg %p75
        %p220 = scmp.lt.s32.totalorder %s24, 1
        %s221 = scalar_select %p220, %s24, 1
        %s222 = scalar_lea.vmem %s2, %s221
        %p223 = pneg %p104
        %p224 = pneg %p101
        %p225 = pneg %p130
        %p226 = pneg %p127
        %s227 = smul.u32 2, %s23
        %p228 = scmp.lt.s32.totalorder %s24, 1
        %s229 = scalar_select %p228, %s24, 1
        %s230 = scalar_lea.vmem %s2, %s229
        %s231 = smul.u32 2, %s23
        %p233 = scmp.eq.s32.totalorder %s24, 0
        // Predicated region
        $region41: #{tpu_custom_call.1} parent=31 // pred_check
          %p234 = pneg %p233
        $region42: #{tpu_custom_call.1} parent=31 // pred_check_branch
          %236 = sbr.rel (%p234) target = $region44
        $region43: #{tpu_custom_call.1} parent=31 // pred_region
          %vm237 = vcmask 7168
          %238 = vst.msk [vmem:[#allocation2] sm:$0xff] %vm237, -inf
          %239 = vst.msk [vmem:[#allocation2 + $0x8] sm:$0xff] %vm237, -inf
          %240 = vst.msk [vmem:[#allocation3] sm:$0xff] %vm237, 0.0
          %241 = vst.msk [vmem:[#allocation3 + $0x8] sm:$0xff] %vm237, 0.0
        $region44: #{tpu_custom_call.1} parent=31 // pred_fallthru
          _
        %v242 = vld [vmem:[#allocation4] sm:$0xf]
        %v243 = vld [vmem:[#allocation4 + $0x4] sm:$0xf]
        %v244 = vld [vmem:[%s206] sm:$0xf]
        %v245 = vld [vmem:[%s206 + $0x4] sm:$0xf]
        %v246 = vld [vmem:[%s206 + $0x8] sm:$0xf]
        %v247 = vld [vmem:[%s206 + $0xc] sm:$0xf]
        %v248 = vld [vmem:[%s230] sm:$0x1]
        %v250 = vlaneseq
        %v251 = vshrl.u32 %v250, 7
        %v252 = vsub.s32 0, %v251
        %v253 = vrot.slane %v248, %v252
        %v257 = vunpack.c.l.b16 %v242
        %v258 = vunpack.c.l.b16 %v243
        %v259 = vpack.c.b16 %v258, %v257
        %v264 = vunpack.c.l.b16 %v244
        %v265 = vunpack.c.l.b16 %v245
        %v266 = vunpack.c.l.b16 %v246
        %v267 = vunpack.c.l.b16 %v247
        %v268 = vpack.c.b16 %v265, %v264
        %v269 = vpack.c.b16 %v267, %v266
        %vm272 = vcmask 261120
        %v274 = vsel %vm272, %v259, 0
        %276 = vmatprep.subr.bf16.mxu0 0
        %277 = vmatpush1.bf16.msra.mxu0 %v268
        %278 = vmatprep.subr.bf16.mxu0 0
        %279 = vmatpush1.bf16.msra.mxu0 %v269
        %280 = vmatprep.subr.bf16.mxu0 0
        %281 = vmatpush1.bf16.msra.mxu0 0
        %282 = vmatprep.subr.bf16.mxu0 0
        %283 = vmatpush1.bf16.msra.mxu0 0
        %284 = vmatprep.subr.bf16.mxu0 0
        %285 = vmatpush1.bf16.msra.mxu0 0
        %286 = vmatprep.subr.bf16.mxu0 0
        %287 = vmatpush1.bf16.msra.mxu0 0
        %288 = vmatprep.subr.bf16.mxu0 0
        %289 = vmatpush1.bf16.msra.mxu0 0
        %290 = vmatprep.subr.bf16.mxu0 0
        %291 = vmatpush1.bf16.msra.mxu0 0
        %292 = vmatprep.subr.bf16.mxu0 0
        %293 = vmatpush1.bf16.msra.mxu0 0
        %294 = vmatprep.subr.bf16.mxu0 0
        %295 = vmatpush1.bf16.msra.mxu0 0
        %296 = vmatprep.subr.bf16.mxu0 0
        %297 = vmatpush1.bf16.msra.mxu0 0
        %298 = vmatprep.subr.bf16.mxu0 0
        %299 = vmatpush1.bf16.msra.mxu0 0
        %300 = vmatprep.subr.bf16.mxu0 0
        %301 = vmatpush1.bf16.msra.mxu0 0
        %302 = vmatprep.subr.bf16.mxu0 0
        %303 = vmatpush1.bf16.msra.mxu0 0
        %304 = vmatprep.subr.bf16.mxu0 0
        %305 = vmatpush1.bf16.msra.mxu0 0
        %306 = vmatprep.subr.bf16.mxu0 0
        %307 = vmatpush1.bf16.msra.mxu0 0
        %308 = vmatprep.mubr.bf16.mxu0 0
        %309 = vmatmul.mubr.bf16.gmra.mrb[0].mxu0 %v274
        %v310 = vpop.f32.mrb[0].mxu0
        %v311 = vadd.f32 %v253, %v310
        %v312 = vpop.f32.mrb[0].mxu0
        %v313 = vpop.f32.mrb[0].mxu0
        %v314 = vadd.f32 %v253, %v313
        %v315 = vpop.f32.mrb[0].mxu0
        %316 = vdwg.mxu0
        %v317 = vld [vmem:[#allocation2] sm:$0xff]
        %v318 = vld [vmem:[#allocation2 + $0x8] sm:$0xff]
        %319 = vmax.xlane.f32.xlu0 %v311
        %v320 = vpop.xlane.xlu0 %319
        %321 = vmax.xlane.f32.xlu0 %v314
        %v322 = vpop.xlane.xlu0 %321
        %v323 = vmax.f32 %v317, %v320
        %v324 = vmax.f32 %v318, %v322
        %v325 = vld [vmem:[#allocation3] sm:$0xff]
        %v326 = vld [vmem:[#allocation3 + $0x8] sm:$0xff]
        %v327 = vsub.f32 %v317, %v323
        %v328 = vsub.f32 %v318, %v324
        %v329 = vmul.f32 %v327, 1.442695
        %v330 = vpow.pop %v329
        %v331 = vmul.f32 %v328, 1.442695
        %v332 = vpow.pop %v331
        %v333 = vmul.f32 %v325, %v330
        %v334 = vmul.f32 %v326, %v332
        %336 = vset.pattern.permute.xlu0 0
        %337 = vperm.xlu0 %336, %v323
        %v338 = vpop.permute.xlu0 %337
        %341 = vset.pattern.permute.xlu0 0
        %342 = vperm.xlu0 %341, %v324
        %v343 = vpop.permute.xlu0 %342
        %v345 = vsub.f32 %v311, %v338
        %v346 = vsub.f32 %v314, %v343
        %v347 = vmul.f32 %v345, 1.442695
        %v348 = vpow.pop %v347
        %v349 = vmul.f32 %v346, 1.442695
        %v350 = vpow.pop %v349
        %351 = vadd.xlane.f32.xlu0 %v348
        %v352 = vpop.xlane.xlu0 %351
        %353 = vadd.xlane.f32.xlu0 %v350
        %v354 = vpop.xlane.xlu0 %353
        %v355 = vadd.f32 %v333, %v352
        %v356 = vadd.f32 %v334, %v354
        %vm357 = vcmask 7168
        %358 = vst.msk [vmem:[#allocation3] sm:$0xff] %vm357, %v355
        %359 = vst.msk [vmem:[#allocation3 + $0x8] sm:$0xff] %vm357, %v356
        %360 = vst.msk [vmem:[#allocation2] sm:$0xff] %vm357, %v323
        %361 = vst.msk [vmem:[#allocation2 + $0x8] sm:$0xff] %vm357, %v324
        %s362 = smul.u32 %s24, 128
        %s363 = sshra.s32 %s362, 7
        %s364 = sand.u32 %s362, 127
        %s365 = smul.addr %s363, 8
        %s366 = scalar_lea.vmem [#allocation9], %s365
        %367 = vst [vmem:[%s366] sm:$0xff] %v311
        %368 = vst [vmem:[%s366 + $0x10] sm:$0xff] %v314
        %p369 = scmp.eq.s32.totalorder %s24, 1
        // Predicated region
        $region45: #{tpu_custom_call.1} parent=31 // pred_check
          %p370 = pneg %p369
        $region46: #{tpu_custom_call.1} parent=31 // pred_check_branch
          %372 = sbr.rel (%p370) target = $region48
        $region47: #{tpu_custom_call.1} parent=31 // pred_region
          %v373 = vld [vmem:[#allocation2] sm:$0xff]
          %v374 = vld [vmem:[#allocation2 + $0x8] sm:$0xff]
          %v375 = vld [vmem:[#allocation3] sm:$0xff]
          %v376 = vld [vmem:[#allocation3 + $0x8] sm:$0xff]
          %v377 = vlog2.pop %v375
          %v378 = vmul.f32 %v377, 0.6931472
          %v379 = vlog2.pop %v376
          %v380 = vmul.f32 %v379, 0.6931472
          %v381 = vadd.f32 %v373, %v378
          %v382 = vadd.f32 %v374, %v380
          %v383 = vld [vmem:[#allocation9] sm:$0xff]
          %v384 = vld [vmem:[#allocation9 + $0x8] sm:$0xff]
          %v385 = vld [vmem:[#allocation9 + $0x10] sm:$0xff]
          %v386 = vld [vmem:[#allocation9 + $0x18] sm:$0xff]
          %388 = vset.pattern.permute.xlu0 0
          %389 = vperm.xlu0 %388, %v381
          %v390 = vpop.permute.xlu0 %389
          %393 = vset.pattern.permute.xlu0 0
          %394 = vperm.xlu0 %393, %v382
          %v395 = vpop.permute.xlu0 %394
          %v397 = vsub.f32 %v383, %v390
          %v398 = vsub.f32 %v384, %v390
          %v399 = vsub.f32 %v385, %v395
          %v400 = vsub.f32 %v386, %v395
          %401 = vst [vmem:[#allocation9] sm:$0xff] %v397
          %402 = vst [vmem:[#allocation9 + $0x8] sm:$0xff] %v398
          %403 = vst [vmem:[#allocation9 + $0x10] sm:$0xff] %v399
          %404 = vst [vmem:[#allocation9 + $0x18] sm:$0xff] %v400
        $region48: #{tpu_custom_call.1} parent=31 // pred_fallthru
          _
        // Predicated region
        $region49: #{tpu_custom_call.1} parent=31 // pred_check
          %p405 = pneg %p127
        $region50: #{tpu_custom_call.1} parent=31 // pred_check_branch
          %407 = sbr.rel (%p405) target = $region52
        $region51: #{tpu_custom_call.1} parent=31 // pred_region
          %s408 = smul.u32 2, %s23
          %s410 = ssub.s32 512, 512
          %411 = vsyncadd [#allocation6], %s410
          %s412 = smul.addr %s408, 2
          %s413 = smul.addr %s412, 128
          %s414 = scalar_lea.hbm %s3, %s413
          %s415 = sshll.u32 [#allocation9], 4
          %s416 = int_to_ptr.vmem [resolvable:$true] %s415
          %421 = dma.vmem_to_hbm [thread:$0]  %s416, 512, %s414, [#allocation6], 256, 256, 16
        $region52: #{tpu_custom_call.1} parent=31 // pred_fallthru
          _
        // Predicated region
        $region53: #{tpu_custom_call.1} parent=31 // pred_check
          %p422 = pneg %p127
        $region54: #{tpu_custom_call.1} parent=31 // pred_check_branch
          %424 = sbr.rel (%p422) target = $region56
        $region55: #{tpu_custom_call.1} parent=31 // pred_region
          %425 = dma.done [#allocation6], 512
        $region56: #{tpu_custom_call.1} parent=31 // pred_fallthru
          _
      $region32: #{tpu_custom_call.1} parent=5 // pred_fallthru
        _
      %p426 = scmp.le.s32.totalorder 2, %s14
      // Predicated region
      $region57: #{tpu_custom_call.1} parent=5 // pred_check
        %p427 = pneg %p426
      $region58: #{tpu_custom_call.1} parent=5 // pred_check_branch
        %429 = sbr.rel (%p427) target = $region60
      $region59: #{tpu_custom_call.1} parent=5 // pred_region
        %s430 = ssub.s32 %s14, 2
      $region60: #{tpu_custom_call.1} parent=5 // pred_fallthru
        _
    $region6: #{tpu_custom_call.1} parent=1 // loop_footer
      %s18 = sadd.s32 1, %s14
    $region7: #{tpu_custom_call.1} parent=1 // loop_footer_branch
      %13 = sbr.rel target = $region3
    $region8: #{tpu_custom_call.1} parent=1 // loop_exit
      _
    %431 = vsyncpa [#allocation5], 1
    %s432 = scalar_lea.sflag [#allocation5], 1
    %433 = vsyncpa %s432, 1
    %434 = vsyncpa [#allocation8], 1
    %s435 = scalar_lea.sflag [#allocation8], 1
    %436 = vsyncpa %s435, 1
    %437 = vsyncpa [#allocation6], 1
    %s438 = scalar_lea.sflag [#allocation6], 1
    %439 = vsyncpa %s438, 1

</llo_original>
